<compile_context>
chip_gen: v7x
topology: tpu7x:2x2x1
jax: 0.10.0
libtpu: 0.0.40
codegen_flags: <defaults>
</compile_context>

<pallas_src>
import functools

import jax
import jax.numpy as jnp
from jax.experimental import pallas as pl
from jax.experimental.pallas import tpu as pltpu

EPS = 1e-5


def _layernorm_finalize(r, g, beta, inv_d, out_dtype):
    """LayerNorm over the last dim of r (f32), scale/shift, cast to out_dtype."""
    mean = jnp.sum(r, axis=-1, keepdims=True) * inv_d
    centered = r - mean
    var = jnp.sum(centered * centered, axis=-1, keepdims=True) * inv_d
    inv = jax.lax.rsqrt(var + EPS)
    return (centered * inv * g + beta).astype(out_dtype)


def _fused_kernel(x_res_ref, x_sub_ref, w_ref, b_ref, g_ref, beta_ref, o_ref,
                  *, inv_d):
    """Single-shot path: full (D, D) weight resident, one MXU dot per row tile.

    x_res_ref : (tm, D)  residual input ("inputs" in the PyTorch forward)
    x_sub_ref : (tm, D)  sublayer input (bf16 for MXU)
    w_ref     : (D, D)   linear weight, transposed to (in, out) (bf16)
    b_ref     : (1, D)   linear bias (f32)
    g_ref     : (1, D)   LayerNorm gamma (f32)
    beta_ref  : (1, D)   LayerNorm beta (f32)
    o_ref     : (tm, D)  output
    """
    y = jnp.dot(x_sub_ref[...], w_ref[...], preferred_element_type=jnp.float32)
    y = y + b_ref[...]

    # TODO(synk): training-mode dropout (pltpu PRNG + mask/scale) not implemented;
    # inference-mode dropout is the identity, which is what we compute here.

    r = x_res_ref[...].astype(jnp.float32) + y
    o_ref[...] = _layernorm_finalize(r, g_ref[...], beta_ref[...], inv_d,
                                     o_ref.dtype)


def _ktiled_kernel(x_res_ref, x_sub_ref, w_ref, b_ref, g_ref, beta_ref, o_ref,
                   acc_ref, *, inv_d):
    """K-reduction path for large D: (tm, tk) x (tk, D) partials into an f32
    accumulator; bias + residual + LayerNorm only on the last K step."""
    k = pl.program_id(1)

    @pl.when(k == 0)
    def _():
        acc_ref[...] = jnp.zeros_like(acc_ref)

    acc_ref[...] += jnp.dot(x_sub_ref[...], w_ref[...],
                            preferred_element_type=jnp.float32)

    @pl.when(k == pl.num_programs(1) - 1)
    def _():
        y = acc_ref[...] + b_ref[...]
        r = x_res_ref[...].astype(jnp.float32) + y
        o_ref[...] = _layernorm_finalize(r, g_ref[...], beta_ref[...], inv_d,
                                         o_ref.dtype)


def _vmem_limit_bytes():
    cap = 64 * 1024 * 1024  # conservative fallback (v7x physical VMEM)
    try:
        info = pltpu.get_tpu_info()
        cap = getattr(info, "vmem_capacity_bytes", cap) or cap
    except Exception:
        pass
    # Leave headroom for compiler-internal scratch.
    return int(cap * 7 // 8)


@functools.partial(jax.jit, static_argnames=("tm", "tk", "matmul_dtype"))
def transformer_sublayer(inputs, sub_in, weight_t, bias, gamma, beta,
                         *, tm=256, tk=None, matmul_dtype=jnp.bfloat16):
    """inputs, sub_in: [N, D]; weight_t: [D, D] (in, out); bias/gamma/beta: [D]."""
    N, D = inputs.shape

    # Row tile: as large as requested, clamped to N (toy shapes run as one tile).
    tm_eff = min(tm, N)
    assert N % tm_eff == 0, "N must be divisible by the row tile"

    # K tile: split the contraction only when the full weight would blow VMEM.
    if tk is None:
        tk_eff = 512 if (D >= 2048 and D % 512 == 0) else D
    else:
        tk_eff = tk
    assert D % tk_eff == 0, "D must be divisible by the K tile"
    num_k = D // tk_eff
    use_ktile = tk_eff != D

    # bf16 operands for the MXU (f32 accumulate inside the kernel).
    if matmul_dtype is not None:
        sub_mm = sub_in.astype(matmul_dtype)
        w_mm = weight_t.astype(matmul_dtype)
    else:
        sub_mm, w_mm = sub_in, weight_t

    bias2 = bias.reshape(1, D).astype(jnp.float32)
    gamma2 = gamma.reshape(1, D).astype(jnp.float32)
    beta2 = beta.reshape(1, D).astype(jnp.float32)

    inv_d = 1.0 / float(D)
    single = pl.Buffered(buffer_count=1)  # constant-index operands: no double buffer

    if not use_ktile:
        grid = (N // tm_eff,)
        row_spec = pl.BlockSpec((tm_eff, D), lambda i: (i, 0))
        in_specs = [
            row_spec,                                                # residual rows
            row_spec,                                                # sublayer rows
            pl.BlockSpec((D, D), lambda i: (0, 0), pipeline_mode=single),
            pl.BlockSpec((1, D), lambda i: (0, 0), pipeline_mode=single),
            pl.BlockSpec((1, D), lambda i: (0, 0), pipeline_mode=single),
            pl.BlockSpec((1, D), lambda i: (0, 0), pipeline_mode=single),
        ]
        out_spec = row_spec
        scratch_shapes = []
        kernel = functools.partial(_fused_kernel, inv_d=inv_d)
        dim_sem = ("parallel",)
    else:
        grid = (N // tm_eff, num_k)
        in_specs = [
            pl.BlockSpec((tm_eff, D), lambda i, k: (i, 0)),          # residual rows
            pl.BlockSpec((tm_eff, tk_eff), lambda i, k: (i, k)),     # sublayer rows
            pl.BlockSpec((tk_eff, D), lambda i, k: (k, 0)),          # weight K-slab
            pl.BlockSpec((1, D), lambda i, k: (0, 0), pipeline_mode=single),
            pl.BlockSpec((1, D), lambda i, k: (0, 0), pipeline_mode=single),
            pl.BlockSpec((1, D), lambda i, k: (0, 0), pipeline_mode=single),
        ]
        out_spec = pl.BlockSpec((tm_eff, D), lambda i, k: (i, 0))
        scratch_shapes = [pltpu.VMEM((tm_eff, D), jnp.float32)]
        kernel = functools.partial(_ktiled_kernel, inv_d=inv_d)
        dim_sem = ("parallel", "arbitrary")

    return pl.pallas_call(
        kernel,
        out_shape=jax.ShapeDtypeStruct((N, D), inputs.dtype),
        grid_spec=pltpu.PrefetchScalarGridSpec(
            num_scalar_prefetch=0,
            grid=grid,
            in_specs=in_specs,
            out_specs=out_spec,
            scratch_shapes=scratch_shapes,
        ),
        compiler_params=pltpu.CompilerParams(
            dimension_semantics=dim_sem,
            vmem_limit_bytes=_vmem_limit_bytes(),
        ),
    )(inputs, sub_mm, w_mm, bias2, gamma2, beta2)


def _reference(inputs, sub_in, weight_t, bias, gamma, beta,
               matmul_dtype=jnp.bfloat16):
    if matmul_dtype is not None:
        y = jnp.dot(sub_in.astype(matmul_dtype), weight_t.astype(matmul_dtype),
                    preferred_element_type=jnp.float32)
    else:
        y = sub_in @ weight_t
    y = y + bias
    r = inputs + y
    mean = jnp.mean(r, axis=-1, keepdims=True)
    var = jnp.mean((r - mean) ** 2, axis=-1, keepdims=True)
    return (r - mean) / jnp.sqrt(var + EPS) * gamma + beta


def _make_case(key, n, d, init_std=0.02):
    k_x, k_s, k_w, k_b, k_g = jax.random.split(key, 5)
    inputs = jax.random.normal(k_x, (n, d), dtype=jnp.float32)
    sub_in = jax.random.normal(k_s, (n, d), dtype=jnp.float32)
    # Sublayer (Linear) params: W is (out, in) in PyTorch; pass W^T = (in, out).
    w = jax.random.normal(k_w, (d, d), dtype=jnp.float32) * init_std
    bias = jax.random.normal(k_b, (d,), dtype=jnp.float32) * init_std
    # LayerNorm params: gamma ~ N(1.0, init_std), beta = 0 (reset_parameters).
    gamma = 1.0 + init_std * jax.random.normal(k_g, (d,), dtype=jnp.float32)
    beta = jnp.zeros((d,), dtype=jnp.float32)
    return inputs, sub_in, w.T, bias, gamma, beta


if __name__ == "__main__":
    batch, seq, hidden = 2, 8, 32
    key = jax.random.PRNGKey(0)
    k1, k2 = jax.random.split(key)

    # --- case 1: toy shape, fused (single-K) path ---
    args1 = _make_case(k1, batch * seq, hidden)
    out1 = jax.block_until_ready(transformer_sublayer(*args1))
    ref1 = _reference(*args1)
    assert jnp.allclose(out1, ref1, atol=1e-3, rtol=1e-3), "mismatch (fused path)"

    # --- case 2: lane-aligned D=256, K-tiled path (tk=128) exercised explicitly ---
    args2 = _make_case(k2, batch * seq, 256)
    out2 = jax.block_until_ready(transformer_sublayer(*args2, tk=128))
    ref2 = _reference(*args2)
    assert jnp.allclose(out2, ref2, atol=1e-3, rtol=1e-3), "mismatch (K-tiled path)"

    print("KERNEL_OK")
</pallas_src>

<mosaic_0001>
module attributes {stable_mosaic.version = 11 : i64} {
  func.func @_fused_kernel(%arg0: i32, %arg1: memref<16x32xf32, #tpu.memory_space<vmem>>, %arg2: memref<16x32xbf16, #tpu.memory_space<vmem>>, %arg3: memref<32x32xbf16, #tpu.memory_space<vmem>>, %arg4: memref<1x32xf32, #tpu.memory_space<vmem>>, %arg5: memref<1x32xf32, #tpu.memory_space<vmem>>, %arg6: memref<1x32xf32, #tpu.memory_space<vmem>>, %arg7: memref<16x32xf32, #tpu.memory_space<vmem>>) attributes {dimension_semantics = [#tpu.dimension_semantics<parallel>], iteration_bounds = array<i64: 1>, scalar_prefetch = 0 : i64, scratch_operands = 0 : i64, tpu.core_type = #tpu.core_type<tc>, window_params = [{transform_indices = @transform_0, window_bounds = array<i64: 16, 32>}, {transform_indices = @transform_1, window_bounds = array<i64: 16, 32>}, {pipeline_mode = #tpu.pipeline_mode<synchronous>, transform_indices = @transform_2, window_bounds = array<i64: 32, 32>}, {pipeline_mode = #tpu.pipeline_mode<synchronous>, transform_indices = @transform_3, window_bounds = array<i64: 1, 32>}, {pipeline_mode = #tpu.pipeline_mode<synchronous>, transform_indices = @transform_4, window_bounds = array<i64: 1, 32>}, {pipeline_mode = #tpu.pipeline_mode<synchronous>, transform_indices = @transform_5, window_bounds = array<i64: 1, 32>}, {transform_indices = @transform_6, window_bounds = array<i64: 16, 32>}]} {
    %c0 = arith.constant 0 : index
    %c0_0 = arith.constant 0 : index
    %0 = vector.load %arg2[%c0, %c0_0] : memref<16x32xbf16, #tpu.memory_space<vmem>>, vector<16x32xbf16>
    %c0_1 = arith.constant 0 : index
    %c0_2 = arith.constant 0 : index
    %1 = vector.load %arg3[%c0_1, %c0_2] : memref<32x32xbf16, #tpu.memory_space<vmem>>, vector<32x32xbf16>
    %cst = arith.constant dense<0.000000e+00> : vector<16x32xf32>
    %2 = tpu.matmul %0, %1, %cst {dimension_numbers = #tpu.dot_dimension_numbers<[1], [0], [0], [1], [0, 0, 1, 1], [], []>} : vector<16x32xbf16>, vector<32x32xbf16>, vector<16x32xf32> -> vector<16x32xf32>
    %c0_3 = arith.constant 0 : index
    %c0_4 = arith.constant 0 : index
    %3 = vector.load %arg4[%c0_3, %c0_4] : memref<1x32xf32, #tpu.memory_space<vmem>>, vector<1x32xf32>
    %4 = vector.broadcast %3 : vector<1x32xf32> to vector<16x32xf32>
    %5 = arith.addf %2, %4 : vector<16x32xf32>
    %c0_5 = arith.constant 0 : index
    %c0_6 = arith.constant 0 : index
    %6 = vector.load %arg1[%c0_5, %c0_6] : memref<16x32xf32, #tpu.memory_space<vmem>>, vector<16x32xf32>
    %7 = arith.addf %6, %5 : vector<16x32xf32>
    %c0_7 = arith.constant 0 : index
    %c0_8 = arith.constant 0 : index
    %8 = vector.load %arg5[%c0_7, %c0_8] : memref<1x32xf32, #tpu.memory_space<vmem>>, vector<1x32xf32>
    %c0_9 = arith.constant 0 : index
    %c0_10 = arith.constant 0 : index
    %9 = vector.load %arg6[%c0_9, %c0_10] : memref<1x32xf32, #tpu.memory_space<vmem>>, vector<1x32xf32>
    %cst_11 = arith.constant dense<0.000000e+00> : vector<16xf32>
    %10 = vector.multi_reduction <add>, %7, %cst_11 [1] : vector<16x32xf32> to vector<16xf32>
    %11 = vector.shape_cast %10 : vector<16xf32> to vector<16x1xf32>
    %cst_12 = arith.constant 3.125000e-02 : f32
    %12 = vector.broadcast %cst_12 : f32 to vector<16x1xf32>
    %13 = arith.mulf %11, %12 : vector<16x1xf32>
    %14 = vector.broadcast %13 : vector<16x1xf32> to vector<16x32xf32>
    %15 = arith.subf %7, %14 : vector<16x32xf32>
    %16 = arith.mulf %15, %15 : vector<16x32xf32>
    %cst_13 = arith.constant dense<0.000000e+00> : vector<16xf32>
    %17 = vector.multi_reduction <add>, %16, %cst_13 [1] : vector<16x32xf32> to vector<16xf32>
    %18 = vector.shape_cast %17 : vector<16xf32> to vector<16x1xf32>
    %cst_14 = arith.constant 3.125000e-02 : f32
    %19 = vector.broadcast %cst_14 : f32 to vector<16x1xf32>
    %20 = arith.mulf %18, %19 : vector<16x1xf32>
    %cst_15 = arith.constant 9.99999974E-6 : f32
    %21 = vector.broadcast %cst_15 : f32 to vector<16x1xf32>
    %22 = arith.addf %20, %21 : vector<16x1xf32>
    %23 = math.rsqrt %22 : vector<16x1xf32>
    %24 = vector.broadcast %23 : vector<16x1xf32> to vector<16x32xf32>
    %25 = arith.mulf %15, %24 : vector<16x32xf32>
    %26 = vector.broadcast %8 : vector<1x32xf32> to vector<16x32xf32>
    %27 = arith.mulf %25, %26 : vector<16x32xf32>
    %28 = vector.broadcast %9 : vector<1x32xf32> to vector<16x32xf32>
    %29 = arith.addf %27, %28 : vector<16x32xf32>
    %c0_16 = arith.constant 0 : index
    %c0_17 = arith.constant 0 : index
    %30 = vector.load %arg7[%c0_16, %c0_17] : memref<16x32xf32, #tpu.memory_space<vmem>>, vector<16x32xf32>
    tpu.vector_store %arg7[%c0_16, %c0_17], %29 {strides = array<i32>} : memref<16x32xf32, #tpu.memory_space<vmem>>, vector<16x32xf32>,
    return
  }
  func.func @transform_0(%arg0: i32) -> (i32, i32) {
    %c0_i32 = arith.constant 0 : i32
    %c0_i32_0 = arith.constant 0 : i32
    return %arg0, %c0_i32 : i32, i32
  }
  func.func @transform_1(%arg0: i32) -> (i32, i32) {
    %c0_i32 = arith.constant 0 : i32
    %c0_i32_0 = arith.constant 0 : i32
    return %arg0, %c0_i32 : i32, i32
  }
  func.func @transform_2(%arg0: i32) -> (i32, i32) {
    %c0_i32 = arith.constant 0 : i32
    %c0_i32_0 = arith.constant 0 : i32
    %c0_i32_1 = arith.constant 0 : i32
    return %c0_i32, %c0_i32_0 : i32, i32
  }
  func.func @transform_3(%arg0: i32) -> (i32, i32) {
    %c0_i32 = arith.constant 0 : i32
    %c0_i32_0 = arith.constant 0 : i32
    %c0_i32_1 = arith.constant 0 : i32
    return %c0_i32, %c0_i32_0 : i32, i32
  }
  func.func @transform_4(%arg0: i32) -> (i32, i32) {
    %c0_i32 = arith.constant 0 : i32
    %c0_i32_0 = arith.constant 0 : i32
    %c0_i32_1 = arith.constant 0 : i32
    return %c0_i32, %c0_i32_0 : i32, i32
  }
  func.func @transform_5(%arg0: i32) -> (i32, i32) {
    %c0_i32 = arith.constant 0 : i32
    %c0_i32_0 = arith.constant 0 : i32
    %c0_i32_1 = arith.constant 0 : i32
    return %c0_i32, %c0_i32_0 : i32, i32
  }
  func.func @transform_6(%arg0: i32) -> (i32, i32) {
    %c0_i32 = arith.constant 0 : i32
    %c0_i32_0 = arith.constant 0 : i32
    return %arg0, %c0_i32 : i32, i32
  }
}

</mosaic_0001>

<llo_original>
// kernel: transformer_sublayer.1
$region0: #{transformer_sublayer.1}
  #allocation0 [shape = 'u32[]', space=smem, size = 0x4, offset = 0x4, fixed_abs, tag = 'smem constant byte address 0x4 - core index']
  #allocation1 [shape = 'u32[144,128]{1,0:T(1,128)}', space=vmem, size = 0x12000, scoped, tag = 'internal scratch']
  %s0 = inlined_call_operand.vmem [shape: f32[16,32], index: 0, kind: input, shape index: {}]
  %s1 = inlined_call_operand.vmem [shape: bf16[16,32], index: 1, kind: input, shape index: {}]
  %s2 = inlined_call_operand.vmem [shape: bf16[32,32], index: 2, kind: input, shape index: {}]
  %s3 = inlined_call_operand.vmem [shape: f32[1,32], index: 3, kind: input, shape index: {}]
  %s4 = inlined_call_operand.vmem [shape: f32[1,32], index: 4, kind: input, shape index: {}]
  %s5 = inlined_call_operand.vmem [shape: f32[1,32], index: 5, kind: input, shape index: {}]
  %s6 = inlined_call_operand.hbm [shape: f32[16,32], index: 6, kind: output, shape index: {}]
  %s7 = sld [smem:[#allocation0]]
  $region34: #{transformer_sublayer.1} parent=0
    _
  %s9 = ssub.s32 1, %s7
  %s10 = scalar_select 0, %s9, %s7
  $region1: #{transformer_sublayer.1} parent=0
    #allocation2 [shape = 'u8[8192]{0}', space=vmem, size = 0x2000, scoped, tag = 'output window, operand 0, single buffered']
    #allocation3 [shape = 's32[1]{0}', space=sflag, size = 0x4, scoped, tag = 'scoped memory for transformer_sublayer.1']
    %11 = vsyncpa [#allocation3], 0
    // Predicated region
    $region2: #{transformer_sublayer.1} parent=1 // pred_check
      _
    $region3: #{transformer_sublayer.1} parent=1 // pred_check_branch
      %13 = sbr.rel (0) target = $region5
    $region4: #{transformer_sublayer.1} parent=1 // pred_region
      _
    $region5: #{transformer_sublayer.1} parent=1 // pred_fallthru
      _
    // Predicated region
    $region6: #{transformer_sublayer.1} parent=1 // pred_check
      _
    $region7: #{transformer_sublayer.1} parent=1 // pred_check_branch
      %15 = sbr.rel (0) target = $region9
    $region8: #{transformer_sublayer.1} parent=1 // pred_region
      _
    $region9: #{transformer_sublayer.1} parent=1 // pred_fallthru
      _
    // Predicated region
    $region10: #{transformer_sublayer.1} parent=1 // pred_check
      _
    $region11: #{transformer_sublayer.1} parent=1 // pred_check_branch
      %17 = sbr.rel (0) target = $region13
    $region12: #{transformer_sublayer.1} parent=1 // pred_region
      _
    $region13: #{transformer_sublayer.1} parent=1 // pred_fallthru
      _
    // Predicated region
    $region14: #{transformer_sublayer.1} parent=1 // pred_check
      _
    $region15: #{transformer_sublayer.1} parent=1 // pred_check_branch
      %19 = sbr.rel (0) target = $region17
    $region16: #{transformer_sublayer.1} parent=1 // pred_region
      _
    $region17: #{transformer_sublayer.1} parent=1 // pred_fallthru
      _
    // Predicated region
    $region18: #{transformer_sublayer.1} parent=1 // pred_check
      _
    $region19: #{transformer_sublayer.1} parent=1 // pred_check_branch
      %21 = sbr.rel (0) target = $region21
    $region20: #{transformer_sublayer.1} parent=1 // pred_region
      _
    $region21: #{transformer_sublayer.1} parent=1 // pred_fallthru
      _
    // Predicated region
    $region22: #{transformer_sublayer.1} parent=1 // pred_check
      _
    $region23: #{transformer_sublayer.1} parent=1 // pred_check_branch
      %23 = sbr.rel (0) target = $region25
    $region24: #{transformer_sublayer.1} parent=1 // pred_region
      _
    $region25: #{transformer_sublayer.1} parent=1 // pred_fallthru
      _
    %v25 = vld [vmem:[%s1] sm:$0xf]
    %v26 = vld [vmem:[%s1 + $0x4] sm:$0xf]
    %v27 = vld [vmem:[%s2] sm:$0xf]
    %v28 = vld [vmem:[%s2 + $0x4] sm:$0xf]
    %v29 = vld [vmem:[%s2 + $0x8] sm:$0xf]
    %v30 = vld [vmem:[%s2 + $0xc] sm:$0xf]
    %v31 = vld [vmem:[%s3] sm:$0x1]
    %v33 = vlaneseq
    %v34 = vshrl.u32 %v33, 7
    %v35 = vsub.s32 0, %v34
    %v36 = vrot.slane %v31, %v35
    %v40 = vunpack.c.l.b16 %v25
    %v41 = vunpack.c.l.b16 %v26
    %v42 = vpack.c.b16 %v41, %v40
    %v47 = vunpack.c.l.b16 %v27
    %v48 = vunpack.c.l.b16 %v28
    %v49 = vunpack.c.l.b16 %v29
    %v50 = vunpack.c.l.b16 %v30
    %v51 = vpack.c.b16 %v48, %v47
    %v52 = vpack.c.b16 %v50, %v49
    %vm55 = vcmask 261120
    %v57 = vsel %vm55, %v42, 0
    %59 = vmatprep.subr.bf16.mxu0 0
    %60 = vmatpush1.bf16.msra.mxu0 %v51
    %61 = vmatprep.subr.bf16.mxu0 0
    %62 = vmatpush1.bf16.msra.mxu0 %v52
    %63 = vmatprep.subr.bf16.mxu0 0
    %64 = vmatpush1.bf16.msra.mxu0 0
    %65 = vmatprep.subr.bf16.mxu0 0
    %66 = vmatpush1.bf16.msra.mxu0 0
    %67 = vmatprep.subr.bf16.mxu0 0
    %68 = vmatpush1.bf16.msra.mxu0 0
    %69 = vmatprep.subr.bf16.mxu0 0
    %70 = vmatpush1.bf16.msra.mxu0 0
    %71 = vmatprep.subr.bf16.mxu0 0
    %72 = vmatpush1.bf16.msra.mxu0 0
    %73 = vmatprep.subr.bf16.mxu0 0
    %74 = vmatpush1.bf16.msra.mxu0 0
    %75 = vmatprep.subr.bf16.mxu0 0
    %76 = vmatpush1.bf16.msra.mxu0 0
    %77 = vmatprep.subr.bf16.mxu0 0
    %78 = vmatpush1.bf16.msra.mxu0 0
    %79 = vmatprep.subr.bf16.mxu0 0
    %80 = vmatpush1.bf16.msra.mxu0 0
    %81 = vmatprep.subr.bf16.mxu0 0
    %82 = vmatpush1.bf16.msra.mxu0 0
    %83 = vmatprep.subr.bf16.mxu0 0
    %84 = vmatpush1.bf16.msra.mxu0 0
    %85 = vmatprep.subr.bf16.mxu0 0
    %86 = vmatpush1.bf16.msra.mxu0 0
    %87 = vmatprep.subr.bf16.mxu0 0
    %88 = vmatpush1.bf16.msra.mxu0 0
    %89 = vmatprep.subr.bf16.mxu0 0
    %90 = vmatpush1.bf16.msra.mxu0 0
    %91 = vmatprep.mubr.bf16.mxu0 0
    %92 = vmatmul.mubr.bf16.gmra.mrb[0].mxu0 %v57
    %v93 = vpop.f32.mrb[0].mxu0
    %v94 = vadd.f32 %v36, %v93
    %v95 = vpop.f32.mrb[0].mxu0
    %v96 = vpop.f32.mrb[0].mxu0
    %v97 = vadd.f32 %v36, %v96
    %v98 = vpop.f32.mrb[0].mxu0
    %99 = vdwg.mxu0
    %v100 = vld [vmem:[%s0] sm:$0xff]
    %v101 = vld [vmem:[%s0 + $0x8] sm:$0xff]
    %v102 = vadd.f32 %v100, %v94
    %v103 = vadd.f32 %v101, %v97
    %v104 = vld [vmem:[%s4] sm:$0x1]
    %v105 = vld [vmem:[%s5] sm:$0x1]
    %v106 = vsel %vm55, %v102, 0.0
    %107 = vadd.xlane.f32.xlu0 %v106
    %v108 = vpop.xlane.xlu0 %107
    %v109 = vsel %vm55, %v103, 0.0
    %110 = vadd.xlane.f32.xlu0 %v109
    %v111 = vpop.xlane.xlu0 %110
    %v112 = vmul.f32 %v108, 0.03125
    %v113 = vmul.f32 %v111, 0.03125
    %v114 = vsub.f32 %v102, %v112
    %v115 = vsub.f32 %v103, %v113
    %v116 = vmul.f32 %v114, %v114
    %v117 = vmul.f32 %v115, %v115
    %v118 = vsel %vm55, %v116, 0.0
    %119 = vadd.xlane.f32.xlu0 %v118
    %v120 = vpop.xlane.xlu0 %119
    %v121 = vsel %vm55, %v117, 0.0
    %122 = vadd.xlane.f32.xlu0 %v121
    %v123 = vpop.xlane.xlu0 %122
    %v124 = vmul.f32 %v120, 0.03125
    %v125 = vmul.f32 %v123, 0.03125
    %v126 = vadd.f32 %v124, 1e-05
    %v127 = vadd.f32 %v125, 1e-05
    %v128 = vrsqrt.pop %v126
    %v129 = vrsqrt.pop %v127
    %v130 = vmul.f32 %v114, %v128
    %v131 = vmul.f32 %v115, %v129
    %v133 = vlaneseq
    %v134 = vshrl.u32 %v133, 7
    %v135 = vsub.s32 0, %v134
    %v136 = vrot.slane %v104, %v135
    %v138 = vmul.f32 %v130, %v136
    %v139 = vmul.f32 %v131, %v136
    %v141 = vlaneseq
    %v142 = vshrl.u32 %v141, 7
    %v143 = vsub.s32 0, %v142
    %v144 = vrot.slane %v105, %v143
    %v146 = vadd.f32 %v138, %v144
    %v147 = vadd.f32 %v139, %v144
    %148 = vst.msk [vmem:[#allocation2] sm:$0xff] %vm55, %v146
    %149 = vst.msk [vmem:[#allocation2 + $0x8] sm:$0xff] %vm55, %v147
    // Predicated region
    $region26: #{transformer_sublayer.1} parent=1 // pred_check
      _
    $region27: #{transformer_sublayer.1} parent=1 // pred_check_branch
      %151 = sbr.rel (0) target = $region29
    $region28: #{transformer_sublayer.1} parent=1 // pred_region
      %s153 = ssub.s32 256, 256
      %154 = vsyncadd [#allocation3], %s153
      %s155 = sshll.u32 [#allocation2], 4
      %s156 = int_to_ptr.vmem [resolvable:$true] %s155
      %161 = dma.vmem_to_hbm [thread:$0]  %s156, 256, %s6, [#allocation3], 128, 128, 8
    $region29: #{transformer_sublayer.1} parent=1 // pred_fallthru
      _
    // Predicated region
    $region30: #{transformer_sublayer.1} parent=1 // pred_check
      _
    $region31: #{transformer_sublayer.1} parent=1 // pred_check_branch
      %163 = sbr.rel (0) target = $region33
    $region32: #{transformer_sublayer.1} parent=1 // pred_region
      %164 = dma.done [#allocation3], 256
    $region33: #{transformer_sublayer.1} parent=1 // pred_fallthru
      _
    %165 = vsyncpa [#allocation3], 1

</llo_original>
